<compile_context>
chip_gen: v5e
topology: v5e:2x2
jax: 0.10.0
libtpu: 0.0.40
codegen_flags: <defaults>
</compile_context>

<pallas_src>
import functools

import jax
import jax.numpy as jnp
from jax.experimental import pallas as pl
from jax.experimental.pallas import tpu as pltpu


def _ce_loss_kernel(logits_ref, labels_ref, out_ref, m_ref, l_ref, picked_ref,
                    *, batch, classes, tile_b, tile_c,
                    mask_cols, mask_rows, bf16_exp):
    # logits_ref : [tile_b, tile_c] native dtype (VMEM)
    # labels_ref : [tile_b, 1] int32 (VMEM)
    # out_ref    : [1, 1] f32 (SMEM, one slot per batch tile, resident over k)
    # m/l/picked : [tile_b, 1] f32 VMEM scratch (running max / exp-sum / picked)
    i = pl.program_id(0)          # batch-tile index
    k = pl.program_id(1)          # class-tile index
    nk = pl.num_programs(1)

    @pl.when(k == 0)
    def _init():
        out_ref[0, 0] = jnp.float32(0.0)
        m_ref[...] = jnp.full((tile_b, 1), -jnp.inf, jnp.float32)
        l_ref[...] = jnp.zeros((tile_b, 1), jnp.float32)
        picked_ref[...] = jnp.zeros((tile_b, 1), jnp.float32)

    x = logits_ref[...].astype(jnp.float32)            # [tile_b, tile_c]
    labels = labels_ref[...]                            # [tile_b, 1] int32

    # Global class ids for this tile as a single row (broadcast below).
    cls_row = k * tile_c + jax.lax.broadcasted_iota(jnp.int32, (1, tile_c), 1)
    if mask_cols:                                       # static: only if C % tile_c != 0
        x = jnp.where(cls_row < classes, x, -jnp.inf)

    # Online logsumexp update over the class (lane) axis.
    m_old = m_ref[...]
    m_new = jnp.maximum(m_old, jnp.max(x, axis=-1, keepdims=True))
    xs = x - m_new
    if bf16_exp:
        # v6e/v7x: bf16 exp on the EUP (+ packed VPU); accumulate in f32.
        p = jnp.exp(xs.astype(jnp.bfloat16)).astype(jnp.float32)
    else:
        p = jnp.exp(xs)
    l_ref[...] = jnp.exp(m_old - m_new) * l_ref[...] + jnp.sum(
        p, axis=-1, keepdims=True)
    m_ref[...] = m_new

    # Gather logits[r, labels[r]] via one-hot select (no dynamic gather on TPU).
    onehot = cls_row == labels                           # [tile_b, tile_c]
    picked_ref[...] += jnp.sum(jnp.where(onehot, x, 0.0), axis=-1, keepdims=True)

    @pl.when(k == nk - 1)
    def _finalize():
        lse = m_ref[...] + jnp.log(l_ref[...])           # [tile_b, 1]
        contrib = picked_ref[...] - lse
        if mask_rows:                                    # static: only if B % tile_b != 0
            rows = i * tile_b + jax.lax.broadcasted_iota(jnp.int32, (tile_b, 1), 0)
            contrib = jnp.where(rows < batch, contrib, 0.0)
        out_ref[0, 0] = jnp.sum(contrib)                 # partial sum for this batch tile


def ce_loss_forward(logits, labels, targeted=True, tile_b=None, tile_c=None,
                    bf16_exp=False):
    """Pallas equivalent of CELoss.forward.

    logits: [B, C] float array (any float dtype; NOT upcast outside the kernel)
    labels: [B] integer array, values in [0, C)
    bf16_exp: compute exp in bf16 (v6e/v7x only; keep False on v5e / for
              bit-exact f32 results)
    Returns a scalar float32.
    """
    B, C = logits.shape
    labels2d = labels.astype(jnp.int32).reshape(B, 1)
    itemsize = jnp.dtype(logits.dtype).itemsize

    # ---- tile sizing -------------------------------------------------------
    # Prefer a class tile that divides C so the column mask disappears.
    if tile_c is None:
        if C <= 8192:
            tile_c = C
        else:
            tile_c = 8192
            for cand in (8192, 4096, 2048):
                if C % cand == 0:
                    tile_c = cand
                    break
    tile_c = min(tile_c, C)

    # ~8 MiB logits tile (double-buffered ~16 MiB) — fits v7x's 64 MiB VMEM.
    if tile_b is None:
        budget = 8 * 1024 * 1024
        tile_b = min(B, max(1, budget // (tile_c * itemsize)))
    tile_b = min(tile_b, B)
    if tile_b < B:
        # sublane multiple: 8 for f32, 16 for bf16, 32 for int8/fp8
        sub = max(8, 32 // itemsize)
        tile_b = max(sub, (tile_b // sub) * sub)
        tile_b = min(tile_b, B)

    nb = pl.cdiv(B, tile_b)
    nk = pl.cdiv(C, tile_c)
    mask_cols = (C % tile_c) != 0
    mask_rows = (B % tile_b) != 0

    kernel = functools.partial(
        _ce_loss_kernel, batch=B, classes=C, tile_b=tile_b, tile_c=tile_c,
        mask_cols=mask_cols, mask_rows=mask_rows, bf16_exp=bf16_exp)

    out = pl.pallas_call(
        kernel,
        out_shape=jax.ShapeDtypeStruct((nb, 1), jnp.float32),
        grid_spec=pltpu.PrefetchScalarGridSpec(
            num_scalar_prefetch=0,
            grid=(nb, nk),
            in_specs=[
                pl.BlockSpec((tile_b, tile_c), lambda i, k: (i, k)),
                pl.BlockSpec((tile_b, 1), lambda i, k: (i, 0)),
            ],
            # One SMEM scalar slot per batch tile -> batch axis can be parallel.
            out_specs=pl.BlockSpec((1, 1), lambda i, k: (i, 0),
                                   memory_space=pltpu.SMEM),
            scratch_shapes=[
                pltpu.VMEM((tile_b, 1), jnp.float32),   # running max
                pltpu.VMEM((tile_b, 1), jnp.float32),   # running exp-sum
                pltpu.VMEM((tile_b, 1), jnp.float32),   # picked logit
            ],
        ),
        compiler_params=pltpu.CompilerParams(
            dimension_semantics=("parallel", "arbitrary"),
            vmem_limit_bytes=32 * 1024 * 1024,
        ),
    )(logits, labels2d)

    neg_loss = jnp.sum(out) / jnp.float32(B)            # = -CE (mean)
    if not targeted:
        neg_loss = -neg_loss
    return neg_loss


def _reference(logits, labels, targeted=True):
    # Pure-JAX reference for sanity check.
    logp = jax.nn.log_softmax(logits.astype(jnp.float32), axis=-1)
    picked = jnp.take_along_axis(logp, labels.astype(jnp.int32)[:, None], axis=-1)[:, 0]
    loss = -jnp.mean(picked)
    if not targeted:
        loss = -loss
    return -loss


if __name__ == "__main__":
    key = jax.random.PRNGKey(0)
    k1, k2, k3, k4 = jax.random.split(key, 4)

    # Case 1: small single-tile path (B=8, C=32), f32, targeted.
    B, C = 8, 32
    logits = jax.random.normal(k1, (B, C), dtype=jnp.float32)
    labels = jax.random.randint(k2, (B,), 0, C, dtype=jnp.int32)
    out = jax.block_until_ready(ce_loss_forward(logits, labels, targeted=True))
    ref = _reference(logits, labels, targeted=True)
    assert jnp.allclose(out, ref, atol=1e-5, rtol=1e-5), (out, ref)

    # Case 2: bf16 logits passed straight into the kernel (no wrapper upcast),
    # untargeted branch, f32 exp path.
    logits_bf16 = logits.astype(jnp.bfloat16)
    out_bf = jax.block_until_ready(ce_loss_forward(logits_bf16, labels, targeted=False))
    ref_bf = _reference(logits_bf16, labels, targeted=False)
    assert jnp.allclose(out_bf, ref_bf, atol=1e-4, rtol=1e-4), (out_bf, ref_bf)

    # Case 3: forced small tiles so the 2-D grid, online logsumexp, per-tile
    # output slots and the padded-row / padded-column masks are exercised
    # (B=40 not /16, C=200 not /128).
    B2, C2 = 40, 200
    logits2 = jax.random.normal(k3, (B2, C2), dtype=jnp.float32)
    labels2 = jax.random.randint(k4, (B2,), 0, C2, dtype=jnp.int32)
    out2 = jax.block_until_ready(
        ce_loss_forward(logits2, labels2, targeted=True, tile_b=16, tile_c=128))
    ref2 = _reference(logits2, labels2, targeted=True)
    assert jnp.allclose(out2, ref2, atol=1e-4, rtol=1e-5), (out2, ref2)

    # Case 4: optional bf16-exp fast path (v6e/v7x); loose tolerance since the
    # exp argument is rounded to bf16.
    out_bfexp = jax.block_until_ready(
        ce_loss_forward(logits_bf16, labels, targeted=True, bf16_exp=True))
    ref_bfexp = _reference(logits_bf16, labels, targeted=True)
    assert jnp.allclose(out_bfexp, ref_bfexp, atol=5e-2, rtol=5e-2), (out_bfexp, ref_bfexp)

    print("KERNEL_OK")
</pallas_src>

<mosaic_0001>
module attributes {stable_mosaic.version = 11 : i64} {
  func.func @_ce_loss_kernel(%arg0: i32, %arg1: i32, %arg2: memref<8x32xf32, #tpu.memory_space<vmem>>, %arg3: memref<8x1xi32, #tpu.memory_space<vmem>>, %arg4: memref<1x1xf32, #tpu.memory_space<smem>>, %arg5: memref<8x1xf32, #tpu.memory_space<vmem>>, %arg6: memref<8x1xf32, #tpu.memory_space<vmem>>, %arg7: memref<8x1xf32, #tpu.memory_space<vmem>>) attributes {dimension_semantics = [#tpu.dimension_semantics<parallel>, #tpu.dimension_semantics<arbitrary>], iteration_bounds = array<i64: 1, 1>, scalar_prefetch = 0 : i64, scratch_operands = 3 : i64, tpu.core_type = #tpu.core_type<tc>, window_params = [{transform_indices = @transform_0, window_bounds = array<i64: 8, 32>}, {transform_indices = @transform_1, window_bounds = array<i64: 8, 1>}, {transform_indices = @transform_2, window_bounds = array<i64: 1, 1>}]} {
    %c0_i32 = arith.constant 0 : i32
    %0 = arith.cmpi eq, %arg1, %c0_i32 : i32
    %1 = arith.extui %0 : i1 to i32
    %c0_i32_0 = arith.constant 0 : i32
    %2 = arith.cmpi ne, %1, %c0_i32_0 : i32
    scf.if %2 {
      %cst_21 = arith.constant 0.000000e+00 : f32
      %c0_22 = arith.constant 0 : index
      %c0_23 = arith.constant 0 : index
      %38 = memref.load %arg4[%c0_22, %c0_23] : memref<1x1xf32, #tpu.memory_space<smem>>
      memref.store %cst_21, %arg4[%c0_22, %c0_23] : memref<1x1xf32, #tpu.memory_space<smem>>
      %cst_24 = arith.constant 0xFF800000 : f32
      %39 = vector.broadcast %cst_24 : f32 to vector<8x1xf32>
      %c0_25 = arith.constant 0 : index
      %c0_26 = arith.constant 0 : index
      %40 = vector.load %arg5[%c0_25, %c0_26] : memref<8x1xf32, #tpu.memory_space<vmem>>, vector<8x1xf32>
      tpu.vector_store %arg5[%c0_25, %c0_26], %39 {strides = array<i32>} : memref<8x1xf32, #tpu.memory_space<vmem>>, vector<8x1xf32>,
      %cst_27 = arith.constant 0.000000e+00 : f32
      %41 = vector.broadcast %cst_27 : f32 to vector<8x1xf32>
      %c0_28 = arith.constant 0 : index
      %c0_29 = arith.constant 0 : index
      %42 = vector.load %arg6[%c0_28, %c0_29] : memref<8x1xf32, #tpu.memory_space<vmem>>, vector<8x1xf32>
      tpu.vector_store %arg6[%c0_28, %c0_29], %41 {strides = array<i32>} : memref<8x1xf32, #tpu.memory_space<vmem>>, vector<8x1xf32>,
      %cst_30 = arith.constant 0.000000e+00 : f32
      %43 = vector.broadcast %cst_30 : f32 to vector<8x1xf32>
      %c0_31 = arith.constant 0 : index
      %c0_32 = arith.constant 0 : index
      %44 = vector.load %arg7[%c0_31, %c0_32] : memref<8x1xf32, #tpu.memory_space<vmem>>, vector<8x1xf32>
      tpu.vector_store %arg7[%c0_31, %c0_32], %43 {strides = array<i32>} : memref<8x1xf32, #tpu.memory_space<vmem>>, vector<8x1xf32>,
    } else {
    }
    %c0 = arith.constant 0 : index
    %c0_1 = arith.constant 0 : index
    %3 = vector.load %arg2[%c0, %c0_1] : memref<8x32xf32, #tpu.memory_space<vmem>>, vector<8x32xf32>
    %c0_2 = arith.constant 0 : index
    %c0_3 = arith.constant 0 : index
    %4 = vector.load %arg3[%c0_2, %c0_3] : memref<8x1xi32, #tpu.memory_space<vmem>>, vector<8x1xi32>
    %c32_i32 = arith.constant 32 : i32
    %5 = arith.muli %arg1, %c32_i32 : i32
    %6 = tpu.iota {dimensions = array<i32: 1>} : vector<1x32xi32>
    %7 = vector.broadcast %5 : i32 to vector<1x32xi32>
    %8 = arith.addi %7, %6 : vector<1x32xi32>
    %c0_4 = arith.constant 0 : index
    %c0_5 = arith.constant 0 : index
    %9 = vector.load %arg5[%c0_4, %c0_5] : memref<8x1xf32, #tpu.memory_space<vmem>>, vector<8x1xf32>
    %cst = arith.constant dense<0xFF800000> : vector<8xf32>
    %10 = vector.multi_reduction <maximumf>, %3, %cst [1] : vector<8x32xf32> to vector<8xf32>
    %11 = vector.shape_cast %10 : vector<8xf32> to vector<8x1xf32>
    %12 = arith.maximumf %9, %11 : vector<8x1xf32>
    %13 = vector.broadcast %12 : vector<8x1xf32> to vector<8x32xf32>
    %14 = arith.subf %3, %13 : vector<8x32xf32>
    %15 = math.exp %14 : vector<8x32xf32>
    %16 = arith.subf %9, %12 : vector<8x1xf32>
    %17 = math.exp %16 : vector<8x1xf32>
    %c0_6 = arith.constant 0 : index
    %c0_7 = arith.constant 0 : index
    %18 = vector.load %arg6[%c0_6, %c0_7] : memref<8x1xf32, #tpu.memory_space<vmem>>, vector<8x1xf32>
    %19 = arith.mulf %17, %18 : vector<8x1xf32>
    %cst_8 = arith.constant dense<0.000000e+00> : vector<8xf32>
    %20 = vector.multi_reduction <add>, %15, %cst_8 [1] : vector<8x32xf32> to vector<8xf32>
    %21 = vector.shape_cast %20 : vector<8xf32> to vector<8x1xf32>
    %22 = arith.addf %19, %21 : vector<8x1xf32>
    %c0_9 = arith.constant 0 : index
    %c0_10 = arith.constant 0 : index
    %23 = vector.load %arg6[%c0_9, %c0_10] : memref<8x1xf32, #tpu.memory_space<vmem>>, vector<8x1xf32>
    tpu.vector_store %arg6[%c0_9, %c0_10], %22 {strides = array<i32>} : memref<8x1xf32, #tpu.memory_space<vmem>>, vector<8x1xf32>,
    %c0_11 = arith.constant 0 : index
    %c0_12 = arith.constant 0 : index
    %24 = vector.load %arg5[%c0_11, %c0_12] : memref<8x1xf32, #tpu.memory_space<vmem>>, vector<8x1xf32>
    tpu.vector_store %arg5[%c0_11, %c0_12], %12 {strides = array<i32>} : memref<8x1xf32, #tpu.memory_space<vmem>>, vector<8x1xf32>,
    %25 = vector.broadcast %8 : vector<1x32xi32> to vector<8x32xi32>
    %26 = vector.broadcast %4 : vector<8x1xi32> to vector<8x32xi32>
    %27 = arith.cmpi eq, %25, %26 : vector<8x32xi32>
    %c0_13 = arith.constant 0 : index
    %c0_14 = arith.constant 0 : index
    %28 = vector.load %arg7[%c0_13, %c0_14] : memref<8x1xf32, #tpu.memory_space<vmem>>, vector<8x1xf32>
    %cst_15 = arith.constant 0.000000e+00 : f32
    %29 = vector.broadcast %cst_15 : f32 to vector<8x32xf32>
    %30 = arith.select %27, %3, %29 : vector<8x32xi1>, vector<8x32xf32>
    %cst_16 = arith.constant dense<0.000000e+00> : vector<8xf32>
    %31 = vector.multi_reduction <add>, %30, %cst_16 [1] : vector<8x32xf32> to vector<8xf32>
    %32 = vector.shape_cast %31 : vector<8xf32> to vector<8x1xf32>
    %33 = arith.addf %28, %32 : vector<8x1xf32>
    %c0_17 = arith.constant 0 : index
    %c0_18 = arith.constant 0 : index
    %34 = vector.load %arg7[%c0_17, %c0_18] : memref<8x1xf32, #tpu.memory_space<vmem>>, vector<8x1xf32>
    tpu.vector_store %arg7[%c0_17, %c0_18], %33 {strides = array<i32>} : memref<8x1xf32, #tpu.memory_space<vmem>>, vector<8x1xf32>,
    %c0_i32_19 = arith.constant 0 : i32
    %35 = arith.cmpi eq, %arg1, %c0_i32_19 : i32
    %36 = arith.extui %35 : i1 to i32
    %c0_i32_20 = arith.constant 0 : i32
    %37 = arith.cmpi ne, %36, %c0_i32_20 : i32
    scf.if %37 {
      %c0_21 = arith.constant 0 : index
      %c0_22 = arith.constant 0 : index
      %38 = vector.load %arg5[%c0_21, %c0_22] : memref<8x1xf32, #tpu.memory_space<vmem>>, vector<8x1xf32>
      %c0_23 = arith.constant 0 : index
      %c0_24 = arith.constant 0 : index
      %39 = vector.load %arg6[%c0_23, %c0_24] : memref<8x1xf32, #tpu.memory_space<vmem>>, vector<8x1xf32>
      %40 = math.log %39 : vector<8x1xf32>
      %41 = arith.addf %38, %40 : vector<8x1xf32>
      %c0_25 = arith.constant 0 : index
      %c0_26 = arith.constant 0 : index
      %42 = vector.load %arg7[%c0_25, %c0_26] : memref<8x1xf32, #tpu.memory_space<vmem>>, vector<8x1xf32>
      %43 = arith.subf %42, %41 : vector<8x1xf32>
      %44 = vector.shape_cast %43 : vector<8x1xf32> to vector<1x8x1xf32>
      %cst_27 = arith.constant dense<0.000000e+00> : vector<1xf32>
      %45 = vector.multi_reduction <add>, %44, %cst_27 [1, 2] : vector<1x8x1xf32> to vector<1xf32>
      %46 = vector.shape_cast %45 : vector<1xf32> to vector<1x1x1xf32>
      %47 = vector.extract %46[0, 0, 0] : f32 from vector<1x1x1xf32>
      %c0_28 = arith.constant 0 : index
      %c0_29 = arith.constant 0 : index
      %48 = memref.load %arg4[%c0_28, %c0_29] : memref<1x1xf32, #tpu.memory_space<smem>>
      memref.store %47, %arg4[%c0_28, %c0_29] : memref<1x1xf32, #tpu.memory_space<smem>>
    } else {
    }
    return
  }
  func.func @transform_0(%arg0: i32, %arg1: i32) -> (i32, i32) {
    %c0_i32 = arith.constant 0 : i32
    return %arg0, %arg1 : i32, i32
  }
  func.func @transform_1(%arg0: i32, %arg1: i32) -> (i32, i32) {
    %c0_i32 = arith.constant 0 : i32
    %c0_i32_0 = arith.constant 0 : i32
    return %arg0, %c0_i32 : i32, i32
  }
  func.func @transform_2(%arg0: i32, %arg1: i32) -> (i32, i32) {
    %c0_i32 = arith.constant 0 : i32
    %c0_i32_0 = arith.constant 0 : i32
    return %arg0, %c0_i32 : i32, i32
  }
}

</mosaic_0001>

<llo_original>
// kernel: tpu_custom_call.1
$region0: #{tpu_custom_call.1}
  #allocation0 [shape = 'u32[]', space=smem, size = 0x4, offset = 0x4, fixed_abs, tag = 'smem constant byte address 0x4 - core index']
  #allocation1 [shape = 'u32[72,128]{1,0:T(1,128)}', space=vmem, size = 0x9000, scoped, tag = 'internal scratch']
  #allocation2 [shape = 'f32[8,1]{1,0:T(8,128)}', space=vmem, size = 0x1000, scoped, tag = 'scratch operand']
  #allocation3 [shape = 'f32[8,1]{1,0:T(8,128)}', space=vmem, size = 0x1000, scoped, tag = 'scratch operand']
  #allocation4 [shape = 'f32[8,1]{1,0:T(8,128)}', space=vmem, size = 0x1000, scoped, tag = 'scratch operand']
  %s0 = inlined_call_operand.vmem [shape: f32[8,32], index: 0, kind: input, shape index: {}]
  %s1 = inlined_call_operand.vmem [shape: s32[8,1], index: 1, kind: input, shape index: {}]
  %s2 = inlined_call_operand.hbm [shape: f32[1,1], index: 2, kind: output, shape index: {}]
  %s3 = sld [smem:[#allocation0]]
  $region26: #{tpu_custom_call.1} parent=0
    _
  %s5 = ssub.s32 1, %s3
  %s6 = scalar_select 0, %s5, %s3
  $region1: #{tpu_custom_call.1} parent=0
    #allocation5 [shape = 'u8[512]{0}', space=smem, size = 0x200, scoped, tag = 'output window, operand 0, single buffered']
    #allocation6 [shape = 's32[1]{0}', space=sflag, size = 0x4, scoped, tag = 'scoped memory for tpu_custom_call.1']
    %7 = vsyncpa [#allocation6], 0
    // Predicated region
    $region2: #{tpu_custom_call.1} parent=1 // pred_check
      _
    $region3: #{tpu_custom_call.1} parent=1 // pred_check_branch
      %9 = sbr.rel (0) target = $region5
    $region4: #{tpu_custom_call.1} parent=1 // pred_region
      _
    $region5: #{tpu_custom_call.1} parent=1 // pred_fallthru
      _
    // Predicated region
    $region6: #{tpu_custom_call.1} parent=1 // pred_check
      _
    $region7: #{tpu_custom_call.1} parent=1 // pred_check_branch
      %11 = sbr.rel (0) target = $region9
    $region8: #{tpu_custom_call.1} parent=1 // pred_region
      _
    $region9: #{tpu_custom_call.1} parent=1 // pred_fallthru
      _
    %p12 = scmp.eq.s32.totalorder 0, 0
    // Predicated region
    $region10: #{tpu_custom_call.1} parent=1 // pred_check
      %p13 = pneg %p12
    $region11: #{tpu_custom_call.1} parent=1 // pred_check_branch
      %15 = sbr.rel (%p13) target = $region13
    $region12: #{tpu_custom_call.1} parent=1 // pred_region
      %s16 = scalar_lea.smem [#allocation5], 0
      %17 = sst [smem:[%s16]] 0.0
      %vm18 = vcmask 7168
      %19 = vst.msk [vmem:[#allocation2] sm:$0xff] %vm18, -inf
      %20 = vst.msk [vmem:[#allocation3] sm:$0xff] %vm18, 0.0
      %21 = vst.msk [vmem:[#allocation4] sm:$0xff] %vm18, 0.0
    $region13: #{tpu_custom_call.1} parent=1 // pred_fallthru
      _
    %v22 = vld [vmem:[%s0] sm:$0xff]
    %v23 = vld [vmem:[%s1] sm:$0xff]
    %s24 = smul.u32 0, 32
    %v25 = vlaneseq
    %v26 = vand.u32 %v25, 127
    %v27 = vstv %s24
    %v28 = vadd.s32 %v27, %v26
    %v29 = vld [vmem:[#allocation2] sm:$0xff]
    %vm30 = vcmask 261120
    %v31 = vsel %vm30, %v22, -inf
    %32 = vmax.xlane.f32.xlu0 %v31
    %v33 = vpop.xlane.xlu0 %32
    %v34 = vmax.f32 %v29, %v33
    %36 = vset.pattern.permute.xlu0 0
    %37 = vperm.xlu0 %36, %v34
    %v38 = vpop.permute.xlu0 %37
    %v40 = vsub.f32 %v22, %v38
    %v41 = vmul.f32 %v40, 1.442695
    %v42 = vpow.pop %v41
    %v43 = vsub.f32 %v29, %v34
    %v44 = vmul.f32 %v43, 1.442695
    %v45 = vpow.pop %v44
    %v46 = vld [vmem:[#allocation3] sm:$0xff]
    %v47 = vmul.f32 %v45, %v46
    %v48 = vsel %vm30, %v42, 0.0
    %49 = vadd.xlane.f32.xlu0 %v48
    %v50 = vpop.xlane.xlu0 %49
    %v51 = vadd.f32 %v47, %v50
    %vm52 = vcmask 7168
    %53 = vst.msk [vmem:[#allocation3] sm:$0xff] %vm52, %v51
    %54 = vst.msk [vmem:[#allocation2] sm:$0xff] %vm52, %v34
    %55 = vset.pattern.permute.xlu0 0
    %56 = vperm.xlu0 %55, %v23
    %v57 = vpop.permute.xlu0 %56
    %vm58 = vcmp.eq.s32.totalorder %v28, %v57
    %v59 = vld [vmem:[#allocation4] sm:$0xff]
    %v60 = vsel %vm58, %v22, 0.0
    %v61 = vsel %vm30, %v60, 0.0
    %62 = vadd.xlane.f32.xlu0 %v61
    %v63 = vpop.xlane.xlu0 %62
    %v64 = vadd.f32 %v59, %v63
    %65 = vst.msk [vmem:[#allocation4] sm:$0xff] %vm52, %v64
    // Predicated region
    $region14: #{tpu_custom_call.1} parent=1 // pred_check
      %p66 = pneg %p12
    $region15: #{tpu_custom_call.1} parent=1 // pred_check_branch
      %68 = sbr.rel (%p66) target = $region17
    $region16: #{tpu_custom_call.1} parent=1 // pred_region
      %v69 = vld [vmem:[#allocation2] sm:$0xff]
      %v70 = vld [vmem:[#allocation3] sm:$0xff]
      %v71 = vlog2.pop %v70
      %v72 = vmul.f32 %v71, 0.6931472
      %v73 = vadd.f32 %v69, %v72
      %v74 = vld [vmem:[#allocation4] sm:$0xff]
      %v75 = vsub.f32 %v74, %v73
      %v76 = vsel %vm52, %v75, 0.0
      %77 = vadd.xlane.f32.xlu0 %v76
      %v78 = vpop.xlane.xlu0 %77
      %v79 = vrot.slane %v78, 4
      %v80 = vadd.f32 %v78, %v79
      %v81 = vrot.slane %v80, 2
      %v82 = vadd.f32 %v80, %v81
      %v83 = vrot.slane %v82, 1
      %v84 = vadd.f32 %v82, %v83
      %s85 = vtos %v84
      %s86 = scalar_lea.smem [#allocation5], 0
      %87 = sst [smem:[%s86]] %s85
    $region17: #{tpu_custom_call.1} parent=1 // pred_fallthru
      _
    // Predicated region
    $region18: #{tpu_custom_call.1} parent=1 // pred_check
      _
    $region19: #{tpu_custom_call.1} parent=1 // pred_check_branch
      %89 = sbr.rel (0) target = $region21
    $region20: #{tpu_custom_call.1} parent=1 // pred_region
      %91 = vsyncadd [#allocation6], 0
      %s93 = sshll.u32 %s2, 4
      %s94 = int_to_ptr.hbm [resolvable:$true] %s93
      %96 = dma.smem_to_hbm [#allocation5], 16, %s94, [#allocation6]
    $region21: #{tpu_custom_call.1} parent=1 // pred_fallthru
      _
    // Predicated region
    $region22: #{tpu_custom_call.1} parent=1 // pred_check
      _
    $region23: #{tpu_custom_call.1} parent=1 // pred_check_branch
      %98 = sbr.rel (0) target = $region25
    $region24: #{tpu_custom_call.1} parent=1 // pred_region
      %100 = dma.done [#allocation6], 16
    $region25: #{tpu_custom_call.1} parent=1 // pred_fallthru
      _
    %101 = sfence
    %102 = vsyncpa [#allocation6], 1

</llo_original>
